<compile_context>
chip_gen: v6e
topology: v6e:2x2x1
jax: 0.10.0
libtpu: 0.0.40
codegen_flags: <defaults>
</compile_context>

<pallas_src>
import math
import functools

import jax
import jax.numpy as jnp
from jax.experimental import pallas as pl
from jax.experimental.pallas import tpu as pltpu


def _round_up(x, m):
    return (x + m - 1) // m * m


def _vmem_limit_bytes():
    """Generation-aware VMEM limit (~100 MiB on 128-MiB chips, ~50 MiB on v7x)."""
    cap = None
    try:
        cap = getattr(pltpu.get_tpu_info(), "vmem_capacity_bytes", None)
    except Exception:
        cap = None
    if not cap or cap <= 0:
        cap = 64 * 1024 * 1024          # conservative fallback: v7x per-core VMEM
    return int(min(cap * 0.78, cap - 8 * 1024 * 1024))


def _pick_time_tile(halo, C_in, C_out, K, in_isize, out_isize, vmem_limit):
    """Largest time tile (multiple of 128) whose pipeline buffers fit the budget."""
    usable = int(vmem_limit * 0.6)       # headroom for Mosaic internal scratch
    ci = _round_up(max(C_in, 1), 8)
    co = _round_up(max(C_out, 1), 8)
    w_bytes = 2 * K * co * _round_up(C_in, 128) * in_isize + co * 128 * 4
    best = 128
    for tt in (128, 256, 512, 1024, 2048, 4096):
        x_bytes = 2 * ci * _round_up(tt + halo, 128) * in_isize   # x window, 2 bufs
        o_bytes = 2 * co * tt * out_isize + co * tt * 4           # out 2 bufs + f32 acc
        if w_bytes + x_bytes + o_bytes <= usable:
            best = tt
    return best


def _conv1d_ncw_kernel(x_ref, w_ref, b_ref, o_ref, *, K, dilation, TT):
    # x_ref : (1, 1, C_in, TT + halo)  one time window, time on the lane axis
    # w_ref : (K, C_out, C_in)         per-tap weight matrices
    # b_ref : (C_out, 1)               f32 bias (lane-broadcast)
    # o_ref : (1, C_out, TT)           output tile, written in final NCW layout
    x = x_ref[0, 0]                                  # (C_in, TT + halo), one load
    acc = None
    for k in range(K):                               # K small dots, f32 accumulate
        s = k * dilation                             # static lane shift -> XLU
        tap = x[:, s:s + TT]                         # (C_in, TT)
        y = jnp.dot(w_ref[k], tap, preferred_element_type=jnp.float32)
        acc = y if acc is None else acc + y
    o_ref[0] = (acc + b_ref[...]).astype(o_ref.dtype)


def conv_norm_forward(signal, weight, bias, *, stride=1, padding=None,
                      dilation=1, mxu_dtype=None, time_tile=None):
    """Matches ConvNorm.forward: Conv1d(signal) with 'same'-style padding.

    signal   : (B, C_in, T)       -- PyTorch NCW layout
    weight   : (C_out, C_in, K)   -- PyTorch Conv1d weight layout
    bias     : (C_out,)
    mxu_dtype: optional operand dtype for the MXU (e.g. jnp.bfloat16 on
               v6e/v7x); accumulation is always f32, output keeps input dtype.
    returns  : (B, C_out, T_out)  -- PyTorch NCW layout (no post-kernel passes)
    """
    B, C_in, T = signal.shape
    C_out, C_in_w, K = weight.shape
    assert C_in == C_in_w
    if padding is None:
        assert K % 2 == 1
        padding = int(dilation * (K - 1) / 2)
    # TODO(synk): only stride == 1 is implemented (the ConvNorm default).
    assert stride == 1, "kernel implements stride=1 (ConvNorm default)"

    halo = dilation * (K - 1)
    T_out = T + 2 * padding - halo
    assert T_out > 0

    cdt = jnp.dtype(mxu_dtype) if mxu_dtype is not None else signal.dtype
    out_dtype = signal.dtype
    in_isize = jnp.dtype(cdt).itemsize
    out_isize = jnp.dtype(out_dtype).itemsize

    # ---- generation-aware VMEM budget and time tile ----------------------
    vmem_limit = _vmem_limit_bytes()
    tile = time_tile if time_tile is not None else _pick_time_tile(
        halo, C_in, C_out, K, in_isize, out_isize, vmem_limit)
    if T_out <= tile:
        TT = T_out                        # single tile: exact shape, no edge mask
        n_t = 1
    else:
        TT = _round_up(tile, 128)         # lane-dense output tiles
        n_t = pl.cdiv(T_out, TT)          # last output tile may be partial (masked)
    W = TT + halo                         # per-tile input window (with halo)

    # ---- single fused pad + window pass over x (no transposes) -----------
    # 'same' zero padding on the left, and enough zeros on the right that the
    # last window is in-bounds.  Under jit the pad, the windowing and the
    # optional bf16 cast fuse into one HBM pass.
    T_pad = n_t * TT + halo
    x_pad = jnp.pad(signal, ((0, 0), (0, 0),
                             (padding, T_pad - T - padding))).astype(cdt)
    if n_t == 1:
        x_win = x_pad[:, None, :, :]                          # (B, 1, C_in, W)
    else:
        x_win = jnp.stack([x_pad[:, :, i * TT:i * TT + W] for i in range(n_t)],
                          axis=1)                             # (B, n_t, C_in, W)

    # Weight as per-tap (C_out, C_in) mats; bias lane-broadcastable.
    w = jnp.transpose(weight, (2, 0, 1)).astype(cdt)          # (K, C_out, C_in)
    b = bias.astype(jnp.float32).reshape(C_out, 1)

    kernel = functools.partial(_conv1d_ncw_kernel, K=K, dilation=dilation, TT=TT)

    cost = pl.CostEstimate(
        flops=2 * B * T_out * K * C_in * C_out,
        transcendentals=0,
        bytes_accessed=(B * n_t * C_in * W + K * C_out * C_in) * in_isize
                       + B * C_out * T_out * out_isize + C_out * 4)

    out = pl.pallas_call(
        kernel,
        out_shape=jax.ShapeDtypeStruct((B, C_out, T_out), out_dtype),
        grid=(B, n_t),
        in_specs=[
            # One bounded time window per grid step (double-buffered DMA);
            # VMEM use is independent of T.
            pl.BlockSpec((1, 1, C_in, W), lambda bi, ti: (bi, ti, 0, 0)),
            # TODO(synk): weight/bias have constant block indices; a
            # pipeline_mode=pl.Buffered(1) hint would halve their VMEM cost,
            # but it is left off here to stay on the safest lowering path.
            pl.BlockSpec((K, C_out, C_in), lambda bi, ti: (0, 0, 0)),
            pl.BlockSpec((C_out, 1), lambda bi, ti: (0, 0)),
        ],
        out_specs=pl.BlockSpec((1, C_out, TT), lambda bi, ti: (bi, 0, ti)),
        compiler_params=pltpu.CompilerParams(
            dimension_semantics=("parallel", "parallel"),
            vmem_limit_bytes=vmem_limit),
        cost_estimate=cost,
    )(x_win, w, b)

    return out


def init_conv_norm_params(key, in_channels, out_channels, kernel_size,
                          w_init_gain="linear"):
    """Deterministic param init mirroring ConvNorm.__init__ (xavier_uniform)."""
    kw, kb = jax.random.split(key)
    fan_in = in_channels * kernel_size
    fan_out = out_channels * kernel_size
    gain = 1.0  # torch.nn.init.calculate_gain('linear') == 1.0
    a = gain * math.sqrt(6.0 / (fan_in + fan_out))
    weight = jax.random.uniform(kw, (out_channels, in_channels, kernel_size),
                                jnp.float32, minval=-a, maxval=a)
    bound = 1.0 / math.sqrt(fan_in)
    bias = jax.random.uniform(kb, (out_channels,), jnp.float32,
                              minval=-bound, maxval=bound)
    return weight, bias


def _reference_conv1d(signal, weight, bias, padding, dilation):
    out = jax.lax.conv_general_dilated(
        signal, weight,
        window_strides=(1,),
        padding=[(padding, padding)],
        rhs_dilation=(dilation,),
        dimension_numbers=("NCH", "OIH", "NCH"))
    return out + bias[None, :, None]


if __name__ == "__main__":
    key = jax.random.PRNGKey(0)
    k_x, k_p, k_x2, k_p2, k_x3, k_p3 = jax.random.split(key, 6)

    # --- test 1/2: primary small shape; f32 path and bf16-MXU path ---------
    B, C_in, T, C_out, K, d = 2, 8, 16, 16, 3, 1
    pad = int(d * (K - 1) / 2)
    x = jax.random.normal(k_x, (B, C_in, T), jnp.float32)
    weight, bias = init_conv_norm_params(k_p, C_in, C_out, K)
    ref = _reference_conv1d(x, weight, bias, pad, d)

    fwd_f32 = jax.jit(functools.partial(conv_norm_forward, dilation=d))
    out = jax.block_until_ready(fwd_f32(x, weight, bias))
    assert out.shape == ref.shape == (B, C_out, T)
    assert jnp.allclose(out, ref, atol=2e-5, rtol=2e-5), (
        float(jnp.max(jnp.abs(out - ref))))

    fwd_bf16 = jax.jit(functools.partial(conv_norm_forward, dilation=d,
                                         mxu_dtype=jnp.bfloat16))
    out_bf = jax.block_until_ready(fwd_bf16(x, weight, bias))
    assert out_bf.shape == ref.shape
    assert jnp.allclose(out_bf, ref, atol=5e-2, rtol=5e-2), (
        float(jnp.max(jnp.abs(out_bf - ref))))

    # --- test 3: multiple time tiles + partial edge tile + dilation=2 ------
    B2, C_in2, T2, C_out2, K2, d2 = 1, 8, 300, 16, 3, 2
    pad2 = int(d2 * (K2 - 1) / 2)
    x2 = jax.random.normal(k_x2, (B2, C_in2, T2), jnp.float32)
    w2, b2 = init_conv_norm_params(k_p2, C_in2, C_out2, K2)
    out2 = jax.block_until_ready(
        conv_norm_forward(x2, w2, b2, dilation=d2, time_tile=128))
    ref2 = _reference_conv1d(x2, w2, b2, pad2, d2)
    assert out2.shape == ref2.shape == (B2, C_out2, T2)
    assert jnp.allclose(out2, ref2, atol=2e-5, rtol=2e-5), (
        float(jnp.max(jnp.abs(out2 - ref2))))

    # --- test 4: ConvNorm default kernel_size=1 -----------------------------
    x3 = jax.random.normal(k_x3, (2, 8, 16), jnp.float32)
    w3, b3 = init_conv_norm_params(k_p3, 8, 4, 1)
    out3 = jax.block_until_ready(conv_norm_forward(x3, w3, b3))
    ref3 = _reference_conv1d(x3, w3, b3, 0, 1)
    assert out3.shape == ref3.shape == (2, 4, 16)
    assert jnp.allclose(out3, ref3, atol=2e-5, rtol=2e-5), (
        float(jnp.max(jnp.abs(out3 - ref3))))

    print("KERNEL_OK")
</pallas_src>

<mosaic_0001>
module attributes {stable_mosaic.version = 11 : i64} {
  func.func @_conv1d_ncw_kernel(%arg0: i32, %arg1: i32, %arg2: memref<1x1x8x18xf32, #tpu.memory_space<vmem>>, %arg3: memref<3x16x8xf32, #tpu.memory_space<vmem>>, %arg4: memref<16x1xf32, #tpu.memory_space<vmem>>, %arg5: memref<1x16x16xf32, #tpu.memory_space<vmem>>) attributes {dimension_semantics = [#tpu.dimension_semantics<parallel>, #tpu.dimension_semantics<parallel>], iteration_bounds = array<i64: 2, 1>, scalar_prefetch = 0 : i64, scratch_operands = 0 : i64, tpu.core_type = #tpu.core_type<tc>, window_params = [{transform_indices = @transform_0, window_bounds = array<i64: 1, 1, 8, 18>}, {pipeline_mode = #tpu.pipeline_mode<synchronous>, transform_indices = @transform_1, window_bounds = array<i64: 3, 16, 8>}, {pipeline_mode = #tpu.pipeline_mode<synchronous>, transform_indices = @transform_2, window_bounds = array<i64: 16, 1>}, {transform_indices = @transform_3, window_bounds = array<i64: 1, 16, 16>}]} {
    %c0 = arith.constant 0 : index
    %c0_0 = arith.constant 0 : index
    %c0_1 = arith.constant 0 : index
    %c0_2 = arith.constant 0 : index
    %0 = vector.load %arg2[%c0, %c0_0, %c0_1, %c0_2] : memref<1x1x8x18xf32, #tpu.memory_space<vmem>>, vector<1x1x8x18xf32>
    %1 = vector.shape_cast %0 : vector<1x1x8x18xf32> to vector<8x18xf32>
    %2 = vector.extract_strided_slice %1 {offsets = [0, 0], sizes = [8, 16], strides = [1, 1]} : vector<8x18xf32> to vector<8x16xf32>
    %c0_3 = arith.constant 0 : index
    %c0_4 = arith.constant 0 : index
    %c0_5 = arith.constant 0 : index
    %3 = vector.load %arg3[%c0_3, %c0_4, %c0_5] : memref<3x16x8xf32, #tpu.memory_space<vmem>>, vector<1x16x8xf32>
    %4 = vector.shape_cast %3 : vector<1x16x8xf32> to vector<16x8xf32>
    %cst = arith.constant dense<0.000000e+00> : vector<16x16xf32>
    %5 = tpu.matmul %4, %2, %cst {dimension_numbers = #tpu.dot_dimension_numbers<[1], [0], [0], [1], [0, 0, 1, 1], [], []>} : vector<16x8xf32>, vector<8x16xf32>, vector<16x16xf32> -> vector<16x16xf32>
    %6 = vector.extract_strided_slice %1 {offsets = [0, 1], sizes = [8, 16], strides = [1, 1]} : vector<8x18xf32> to vector<8x16xf32>
    %c1 = arith.constant 1 : index
    %c0_6 = arith.constant 0 : index
    %c0_7 = arith.constant 0 : index
    %7 = vector.load %arg3[%c1, %c0_6, %c0_7] : memref<3x16x8xf32, #tpu.memory_space<vmem>>, vector<1x16x8xf32>
    %8 = vector.shape_cast %7 : vector<1x16x8xf32> to vector<16x8xf32>
    %cst_8 = arith.constant dense<0.000000e+00> : vector<16x16xf32>
    %9 = tpu.matmul %8, %6, %cst_8 {dimension_numbers = #tpu.dot_dimension_numbers<[1], [0], [0], [1], [0, 0, 1, 1], [], []>} : vector<16x8xf32>, vector<8x16xf32>, vector<16x16xf32> -> vector<16x16xf32>
    %10 = arith.addf %5, %9 : vector<16x16xf32>
    %11 = vector.extract_strided_slice %1 {offsets = [0, 2], sizes = [8, 16], strides = [1, 1]} : vector<8x18xf32> to vector<8x16xf32>
    %c2 = arith.constant 2 : index
    %c0_9 = arith.constant 0 : index
    %c0_10 = arith.constant 0 : index
    %12 = vector.load %arg3[%c2, %c0_9, %c0_10] : memref<3x16x8xf32, #tpu.memory_space<vmem>>, vector<1x16x8xf32>
    %13 = vector.shape_cast %12 : vector<1x16x8xf32> to vector<16x8xf32>
    %cst_11 = arith.constant dense<0.000000e+00> : vector<16x16xf32>
    %14 = tpu.matmul %13, %11, %cst_11 {dimension_numbers = #tpu.dot_dimension_numbers<[1], [0], [0], [1], [0, 0, 1, 1], [], []>} : vector<16x8xf32>, vector<8x16xf32>, vector<16x16xf32> -> vector<16x16xf32>
    %15 = arith.addf %10, %14 : vector<16x16xf32>
    %c0_12 = arith.constant 0 : index
    %c0_13 = arith.constant 0 : index
    %16 = vector.load %arg4[%c0_12, %c0_13] : memref<16x1xf32, #tpu.memory_space<vmem>>, vector<16x1xf32>
    %17 = vector.broadcast %16 : vector<16x1xf32> to vector<16x16xf32>
    %18 = arith.addf %15, %17 : vector<16x16xf32>
    %c0_14 = arith.constant 0 : index
    %c0_15 = arith.constant 0 : index
    %c0_16 = arith.constant 0 : index
    %19 = vector.load %arg5[%c0_14, %c0_15, %c0_16] : memref<1x16x16xf32, #tpu.memory_space<vmem>>, vector<1x16x16xf32>
    %20 = vector.shape_cast %19 : vector<1x16x16xf32> to vector<16x16xf32>
    %21 = vector.shape_cast %18 : vector<16x16xf32> to vector<1x16x16xf32>
    tpu.vector_store %arg5[%c0_14, %c0_15, %c0_16], %21 {strides = array<i32>} : memref<1x16x16xf32, #tpu.memory_space<vmem>>, vector<1x16x16xf32>,
    return
  }
  func.func @transform_0(%arg0: i32, %arg1: i32) -> (i32, i32, i32, i32) {
    %c0_i32 = arith.constant 0 : i32
    %c0_i32_0 = arith.constant 0 : i32
    %c0_i32_1 = arith.constant 0 : i32
    return %arg0, %arg1, %c0_i32, %c0_i32_0 : i32, i32, i32, i32
  }
  func.func @transform_1(%arg0: i32, %arg1: i32) -> (i32, i32, i32) {
    %c0_i32 = arith.constant 0 : i32
    %c0_i32_0 = arith.constant 0 : i32
    %c0_i32_1 = arith.constant 0 : i32
    %c0_i32_2 = arith.constant 0 : i32
    return %c0_i32, %c0_i32_0, %c0_i32_1 : i32, i32, i32
  }
  func.func @transform_2(%arg0: i32, %arg1: i32) -> (i32, i32) {
    %c0_i32 = arith.constant 0 : i32
    %c0_i32_0 = arith.constant 0 : i32
    %c0_i32_1 = arith.constant 0 : i32
    return %c0_i32, %c0_i32_0 : i32, i32
  }
  func.func @transform_3(%arg0: i32, %arg1: i32) -> (i32, i32, i32) {
    %c0_i32 = arith.constant 0 : i32
    %c0_i32_0 = arith.constant 0 : i32
    return %arg0, %c0_i32, %arg1 : i32, i32, i32
  }
}

</mosaic_0001>

<llo_original>
// kernel: conv_norm_forward.1
$region0: #{conv_norm_forward.1}
  #allocation0 [shape = 'u32[]', space=smem, size = 0x4, offset = 0x4, fixed_abs, tag = 'smem constant byte address 0x4 - core index']
  #allocation1 [shape = 'u32[144,128]{1,0:T(1,128)}', space=vmem, size = 0x12000, scoped, tag = 'internal scratch']
  %s0 = inlined_call_operand.vmem [shape: f32[2,1,8,18], index: 0, kind: input, shape index: {}]
  %s1 = inlined_call_operand.vmem [shape: f32[3,16,8], index: 1, kind: input, shape index: {}]
  %s2 = inlined_call_operand.vmem [shape: f32[16,1], index: 2, kind: input, shape index: {}]
  %s3 = inlined_call_operand.hbm [shape: f32[2,16,16], index: 3, kind: output, shape index: {}]
  %s4 = sld [smem:[#allocation0]]
  $region45: #{conv_norm_forward.1} parent=0
    _
  %s6 = ssub.s32 1, %s4
  %s7 = scalar_select 0, %s6, %s4
  $region1: #{conv_norm_forward.1} parent=0
    #allocation2 [shape = 'u8[16384]{0}', space=vmem, size = 0x4000, scoped, tag = 'output window, operand 0']
    #allocation3 [shape = 's32[2]{0}', space=sflag, size = 0x8, scoped, tag = 'scoped memory for conv_norm_forward.1']
    %8 = vsyncpa [#allocation3], 0
    %s9 = scalar_lea.sflag [#allocation3], 1
    %10 = vsyncpa %s9, 0
    loop: start=0, step=1, limit=4
    $region2: #{conv_norm_forward.1} parent=1 // loop_pre_header
      _
    $region3: #{conv_norm_forward.1} parent=1 // loop_header
      %s12 = sphi 0, %s16
      %p13 = scmp.ge.s32.totalorder %s12, 4
      %s19 = sphi 0, %s31
      %s20 = sphi 0, %s27
      %s21 = sphi 0, %s19
      %s22 = sphi 0, %s20
      %s23 = sphi 0, %s21
      %s24 = sphi 0, %s22
      %s36 = sphi 0, %s38
      %s39 = sphi 0, %s36
      %s40 = sphi 0, %s39
      %s56 = sphi 0, %s40
      %s60 = sphi 0, %s60
      %s62 = sphi 0, %s60
      %s63 = sphi 0, %s62
      %s77 = sphi 0, %s63
      %s81 = sphi 0, %s81
      %s83 = sphi 0, %s81
      %s84 = sphi 0, %s83
      %s98 = sphi 0, %s84
      %s106 = sphi 0, %s108
      %s109 = sphi 0, %s106
      %s110 = sphi 0, %s109
      %s126 = sphi 0, %s110
    $region4: #{conv_norm_forward.1} parent=1 // loop_header_branch
      %15 = sbr.rel (%p13) target = $region8
    $region5: #{conv_norm_forward.1} parent=1 // loop_body
      %s17 = ssub.s32 %s12, 1
      %s18 = ssub.s32 %s12, 2
      %s25 = sadd.s32 1, %s20
      %p26 = scmp.ge.s32.totalorder %s25, 1
      %s27 = scalar_select %p26, 0, %s25
      %s28 = sadd.s32 1, %s19
      %s29 = scalar_select %p26, %s28, %s19
      %p30 = scmp.ge.s32.totalorder %s29, 2
      %s31 = scalar_select %p30, 0, %s29
      %s32 = ssub.s32 %s19, %s31
      %s33 = ssub.s32 %s20, %s27
      %s34 = sor.u32 %s32, %s33
      %p35 = scmp.eq.s32.totalorder %s34, 0
      %s37 = sadd.s32 %s36, 1
      %s38 = scalar_select %p35, %s36, %s37
      %p41 = pneg %p35
      %p42 = scmp.eq.s32.totalorder %s12, 1
      %p43 = por %p41, %p42
      %p44 = scmp.ne.s32.totalorder %s36, %s39
      %p45 = scmp.eq.s32.totalorder %s12, 0
      %p46 = por %p44, %p45
      %p47 = scmp.ne.s32.totalorder %s36, %s39
      %p48 = scmp.eq.s32.totalorder %s17, 1
      %p49 = por %p47, %p48
      %p50 = scmp.ne.s32.totalorder %s39, %s40
      %p51 = scmp.eq.s32.totalorder %s17, 0
      %p52 = por %p50, %p51
      %p53 = scmp.ne.s32.totalorder %s39, %s40
      %p54 = scmp.eq.s32.totalorder %s18, 1
      %p55 = por %p53, %p54
      %p57 = scmp.ne.s32.totalorder %s40, %s56
      %p58 = scmp.eq.s32.totalorder %s18, 0
      %p59 = por %p57, %p58
      %s61 = sadd.s32 %s60, 1
      %p64 = scmp.eq.s32.totalorder %s12, 1
      %p65 = scmp.ne.s32.totalorder %s60, %s62
      %p66 = scmp.eq.s32.totalorder %s12, 0
      %p67 = por %p65, %p66
      %p68 = scmp.ne.s32.totalorder %s60, %s62
      %p69 = scmp.eq.s32.totalorder %s17, 1
      %p70 = por %p68, %p69
      %p71 = scmp.ne.s32.totalorder %s62, %s63
      %p72 = scmp.eq.s32.totalorder %s17, 0
      %p73 = por %p71, %p72
      %p74 = scmp.ne.s32.totalorder %s62, %s63
      %p75 = scmp.eq.s32.totalorder %s18, 1
      %p76 = por %p74, %p75
      %p78 = scmp.ne.s32.totalorder %s63, %s77
      %p79 = scmp.eq.s32.totalorder %s18, 0
      %p80 = por %p78, %p79
      %s82 = sadd.s32 %s81, 1
      %p85 = scmp.eq.s32.totalorder %s12, 1
      %p86 = scmp.ne.s32.totalorder %s81, %s83
      %p87 = scmp.eq.s32.totalorder %s12, 0
      %p88 = por %p86, %p87
      %p89 = scmp.ne.s32.totalorder %s81, %s83
      %p90 = scmp.eq.s32.totalorder %s17, 1
      %p91 = por %p89, %p90
      %p92 = scmp.ne.s32.totalorder %s83, %s84
      %p93 = scmp.eq.s32.totalorder %s17, 0
      %p94 = por %p92, %p93
      %p95 = scmp.ne.s32.totalorder %s83, %s84
      %p96 = scmp.eq.s32.totalorder %s18, 1
      %p97 = por %p95, %p96
      %p99 = scmp.ne.s32.totalorder %s84, %s98
      %p100 = scmp.eq.s32.totalorder %s18, 0
      %p101 = por %p99, %p100
      %s102 = ssub.s32 %s19, %s31
      %s103 = ssub.s32 %s20, %s27
      %s104 = sor.u32 %s102, %s103
      %p105 = scmp.eq.s32.totalorder %s104, 0
      %s107 = sadd.s32 %s106, 1
      %s108 = scalar_select %p105, %s106, %s107
      %p111 = pneg %p105
      %p112 = scmp.eq.s32.totalorder %s12, 1
      %p113 = por %p111, %p112
      %p114 = scmp.ne.s32.totalorder %s106, %s109
      %p115 = scmp.eq.s32.totalorder %s12, 0
      %p116 = por %p114, %p115
      %p117 = scmp.ne.s32.totalorder %s106, %s109
      %p118 = scmp.eq.s32.totalorder %s17, 1
      %p119 = por %p117, %p118
      %p120 = scmp.ne.s32.totalorder %s109, %s110
      %p121 = scmp.eq.s32.totalorder %s17, 0
      %p122 = por %p120, %p121
      %p123 = scmp.ne.s32.totalorder %s109, %s110
      %p124 = scmp.eq.s32.totalorder %s18, 1
      %p125 = por %p123, %p124
      %p127 = scmp.ne.s32.totalorder %s110, %s126
      %p128 = scmp.eq.s32.totalorder %s18, 0
      %p129 = por %p127, %p128
      %p130 = scmp.le.s32.totalorder 1, %s12
      %p131 = scmp.lt.s32.totalorder %s12, 3
      %p132 = pnand %p130, %p131
      %p133 = pneg %p132
      // Predicated region
      $region9: #{conv_norm_forward.1} parent=5 // pred_check
        _
      $region10: #{conv_norm_forward.1} parent=5 // pred_check_branch
        %135 = sbr.rel (%p132) target = $region12
      $region11: #{conv_norm_forward.1} parent=5 // pred_region
        %s136 = ssub.s32 %s12, 1
        // Predicated region
        $region13: #{conv_norm_forward.1} parent=11 // pred_check
          %p137 = pneg %p73
        $region14: #{conv_norm_forward.1} parent=11 // pred_check_branch
          %139 = sbr.rel (%p137) target = $region16
        $region15: #{conv_norm_forward.1} parent=11 // pred_region
          _
        $region16: #{conv_norm_forward.1} parent=11 // pred_fallthru
          _
        // Predicated region
        $region17: #{conv_norm_forward.1} parent=11 // pred_check
          %p140 = pneg %p94
        $region18: #{conv_norm_forward.1} parent=11 // pred_check_branch
          %142 = sbr.rel (%p140) target = $region20
        $region19: #{conv_norm_forward.1} parent=11 // pred_region
          _
        $region20: #{conv_norm_forward.1} parent=11 // pred_fallthru
          _
      $region12: #{conv_norm_forward.1} parent=5 // pred_fallthru
        _
      %p143 = scmp.lt.s32.totalorder %s12, 2
      // Predicated region
      $region21: #{conv_norm_forward.1} parent=5 // pred_check
        %p144 = pneg %p143
      $region22: #{conv_norm_forward.1} parent=5 // pred_check_branch
        %146 = sbr.rel (%p144) target = $region24
      $region23: #{conv_norm_forward.1} parent=5 // pred_region
        // Predicated region
        $region25: #{conv_norm_forward.1} parent=23 // pred_check
          %p147 = pneg %p46
        $region26: #{conv_norm_forward.1} parent=23 // pred_check_branch
          %149 = sbr.rel (%p147) target = $region28
        $region27: #{conv_norm_forward.1} parent=23 // pred_region
          %p150 = scmp.lt.s32.totalorder %s19, 1
          %s151 = scalar_select %p150, %s19, 1
          %p152 = scmp.lt.s32.totalorder %s20, 0
          %s153 = scalar_select %p152, %s20, 0
          %s154 = sadd.s32 %s153, %s151
          %s155 = smul.addr %s154, 8
          %s156 = scalar_lea.vmem %s0, %s155
        $region28: #{conv_norm_forward.1} parent=23 // pred_fallthru
          _
      $region24: #{conv_norm_forward.1} parent=5 // pred_fallthru
        _
      %p157 = scmp.le.s32.totalorder 1, %s12
      %p158 = scmp.lt.s32.totalorder %s12, 3
      %p159 = pnand %p157, %p158
      %p160 = pneg %p159
      // Predicated region
      $region29: #{conv_norm_forward.1} parent=5 // pred_check
        _
      $region30: #{conv_norm_forward.1} parent=5 // pred_check_branch
        %162 = sbr.rel (%p159) target = $region32
      $region31: #{conv_norm_forward.1} parent=5 // pred_region
        %s163 = ssub.s32 %s12, 1
        %p164 = scmp.lt.s32.totalorder %s21, 1
        %s165 = scalar_select %p164, %s21, 1
        %p166 = scmp.lt.s32.totalorder %s22, 0
        %s167 = scalar_select %p166, %s22, 0
        %s168 = sadd.s32 %s167, %s165
        %s169 = smul.addr %s168, 8
        %s170 = scalar_lea.vmem %s0, %s169
        %p171 = pneg %p52
        %p172 = pneg %p49
        %p173 = pneg %p73
        %p174 = pneg %p70
        %p175 = pneg %p94
        %p176 = pneg %p91
        %p177 = pneg %p122
        %p178 = pneg %p119
        %s179 = sand.u32 %s109, 1
        %s180 = scalar_lea.sflag [#allocation3], %s179
        %s181 = sand.u32 %s109, 1
        %s182 = smul.addr %s181, 16
        %s183 = scalar_lea.vmem [#allocation2], %s182
        %p184 = scmp.lt.s32.totalorder %s21, 1
        %s185 = scalar_select %p184, %s21, 1
        %p186 = scmp.lt.s32.totalorder %s22, 0
        %s187 = scalar_select %p186, %s22, 0
        %s188 = sadd.s32 %s187, %s185
        %s189 = smul.addr %s188, 8
        %s190 = scalar_lea.vmem %s0, %s189
        %v191 = vld [vmem:[%s190] sm:$0xff]
        %v192 = vld [vmem:[%s1] sm:$0xff]
        %v193 = vld [vmem:[%s1 + $0x8] sm:$0xff]
        %s194 = scalar_lea.vmem %s1, 16
        %v195 = vld [vmem:[%s194] sm:$0xff]
        %v196 = vld [vmem:[%s194 + $0x8] sm:$0xff]
        %198 = vrot.lane.b32.xlu0 %v191, 127
        %v199 = vpop.permute.xlu0 %198
        %vm201 = vcmask 64512
        %v203 = vsel %vm201, %v195, 0
        %v206 = vsel %vm201, %v196, 0
        %208 = vmatprep.subr.mxu0 0.0
        %209 = vmatpush1.msra.mxu0 0.0
        %210 = vmatprep.subr.mxu0 0.0
        %211 = vmatpush1.msra.mxu0 0.0
        %212 = vmatprep.subr.mxu0 0.0
        %213 = vmatpush1.msra.mxu0 0.0
        %214 = vmatprep.subr.mxu0 0.0
        %215 = vmatpush1.msra.mxu0 0.0
        %216 = vmatprep.subr.mxu0 0.0
        %217 = vmatpush1.msra.mxu0 0.0
        %218 = vmatprep.subr.mxu0 0.0
        %219 = vmatpush1.msra.mxu0 0.0
        %220 = vmatprep.subr.mxu0 0.0
        %221 = vmatpush1.msra.mxu0 0.0
        %222 = vmatprep.subr.mxu0 0.0
        %223 = vmatpush1.msra.mxu0 0.0
        %224 = vmatprep.subr.mxu0 0.0
        %225 = vmatpush1.msra.mxu0 0.0
        %226 = vmatprep.subr.mxu0 0.0
        %227 = vmatpush1.msra.mxu0 0.0
        %228 = vmatprep.subr.mxu0 0.0
        %229 = vmatpush1.msra.mxu0 0.0
        %230 = vmatprep.subr.mxu0 0.0
        %231 = vmatpush1.msra.mxu0 0.0
        %232 = vmatprep.subr.mxu0 0.0
        %233 = vmatpush1.msra.mxu0 0.0
        %234 = vmatprep.subr.mxu0 0.0
        %235 = vmatpush1.msra.mxu0 0.0
        %236 = vmatprep.subr.mxu0 0.0
        %237 = vmatpush1.msra.mxu0 0.0
        %238 = vmatprep.subr.mxu0 0.0
        %239 = vmatpush1.msra.mxu0 %v199
        %240 = vmatprep.subr.mxu0 0.0
        %241 = vmatpush2.msra.mxu0 0.0
        %242 = vmatprep.subr.mxu0 0.0
        %243 = vmatpush2.msra.mxu0 0.0
        %244 = vmatprep.subr.mxu0 0.0
        %245 = vmatpush2.msra.mxu0 0.0
        %246 = vmatprep.subr.mxu0 0.0
        %247 = vmatpush2.msra.mxu0 0.0
        %248 = vmatprep.subr.mxu0 0.0
        %249 = vmatpush2.msra.mxu0 0.0
        %250 = vmatprep.subr.mxu0 0.0
        %251 = vmatpush2.msra.mxu0 0.0
        %252 = vmatprep.subr.mxu0 0.0
        %253 = vmatpush2.msra.mxu0 0.0
        %254 = vmatprep.subr.mxu0 0.0
        %255 = vmatpush2.msra.mxu0 0.0
        %256 = vmatprep.subr.mxu0 0.0
        %257 = vmatpush2.msra.mxu0 0.0
        %258 = vmatprep.subr.mxu0 0.0
        %259 = vmatpush2.msra.mxu0 0.0
        %260 = vmatprep.subr.mxu0 0.0
        %261 = vmatpush2.msra.mxu0 0.0
        %262 = vmatprep.subr.mxu0 0.0
        %263 = vmatpush2.msra.mxu0 0.0
        %264 = vmatprep.subr.mxu0 0.0
        %265 = vmatpush2.msra.mxu0 0.0
        %266 = vmatprep.subr.mxu0 0.0
        %267 = vmatpush2.msra.mxu0 0.0
        %268 = vmatprep.subr.mxu0 0.0
        %269 = vmatpush2.msra.mxu0 0.0
        %270 = vmatprep.subr.mxu0 0.0
        %271 = vmatpush2.msra.mxu0 0.0
        %272 = vmatprep.mubr.f32.mxu0 0.0
        %273 = vmatmul.mubr.f32.gmra.mxu0 %v203
        %v274 = vpop.f32.mrf.mxu0
        %v275 = vadd.f32 0.0, %v274
        %v276 = vpop.f32.mrf.mxu0
        %277 = vmatprep.mubr.f32.mxu0 0.0
        %278 = vmatmul.mubr.f32.gmra.mxu0 %v206
        %v279 = vpop.f32.mrf.mxu0
        %v280 = vadd.f32 0.0, %v279
        %v281 = vpop.f32.mrf.mxu0
        %282 = vdwg.mxu0
        %v284 = vsel %vm201, %v192, 0
        %v287 = vsel %vm201, %v193, 0
        %289 = vmatprep.subr.mxu0 0.0
        %290 = vmatpush1.msra.mxu0 0.0
        %291 = vmatprep.subr.mxu0 0.0
        %292 = vmatpush1.msra.mxu0 0.0
        %293 = vmatprep.subr.mxu0 0.0
        %294 = vmatpush1.msra.mxu0 0.0
        %295 = vmatprep.subr.mxu0 0.0
        %296 = vmatpush1.msra.mxu0 0.0
        %297 = vmatprep.subr.mxu0 0.0
        %298 = vmatpush1.msra.mxu0 0.0
        %299 = vmatprep.subr.mxu0 0.0
        %300 = vmatpush1.msra.mxu0 0.0
        %301 = vmatprep.subr.mxu0 0.0
        %302 = vmatpush1.msra.mxu0 0.0
        %303 = vmatprep.subr.mxu0 0.0
        %304 = vmatpush1.msra.mxu0 0.0
        %305 = vmatprep.subr.mxu0 0.0
        %306 = vmatpush1.msra.mxu0 0.0
        %307 = vmatprep.subr.mxu0 0.0
        %308 = vmatpush1.msra.mxu0 0.0
        %309 = vmatprep.subr.mxu0 0.0
        %310 = vmatpush1.msra.mxu0 0.0
        %311 = vmatprep.subr.mxu0 0.0
        %312 = vmatpush1.msra.mxu0 0.0
        %313 = vmatprep.subr.mxu0 0.0
        %314 = vmatpush1.msra.mxu0 0.0
        %315 = vmatprep.subr.mxu0 0.0
        %316 = vmatpush1.msra.mxu0 0.0
        %317 = vmatprep.subr.mxu0 0.0
        %318 = vmatpush1.msra.mxu0 0.0
        %319 = vmatprep.subr.mxu0 0.0
        %320 = vmatpush1.msra.mxu0 %v191
        %321 = vmatprep.subr.mxu0 0.0
        %322 = vmatpush2.msra.mxu0 0.0
        %323 = vmatprep.subr.mxu0 0.0
        %324 = vmatpush2.msra.mxu0 0.0
        %325 = vmatprep.subr.mxu0 0.0
        %326 = vmatpush2.msra.mxu0 0.0
        %327 = vmatprep.subr.mxu0 0.0
        %328 = vmatpush2.msra.mxu0 0.0
        %329 = vmatprep.subr.mxu0 0.0
        %330 = vmatpush2.msra.mxu0 0.0
        %331 = vmatprep.subr.mxu0 0.0
        %332 = vmatpush2.msra.mxu0 0.0
        %333 = vmatprep.subr.mxu0 0.0
        %334 = vmatpush2.msra.mxu0 0.0
        %335 = vmatprep.subr.mxu0 0.0
        %336 = vmatpush2.msra.mxu0 0.0
        %337 = vmatprep.subr.mxu0 0.0
        %338 = vmatpush2.msra.mxu0 0.0
        %339 = vmatprep.subr.mxu0 0.0
        %340 = vmatpush2.msra.mxu0 0.0
        %341 = vmatprep.subr.mxu0 0.0
        %342 = vmatpush2.msra.mxu0 0.0
        %343 = vmatprep.subr.mxu0 0.0
        %344 = vmatpush2.msra.mxu0 0.0
        %345 = vmatprep.subr.mxu0 0.0
        %346 = vmatpush2.msra.mxu0 0.0
        %347 = vmatprep.subr.mxu0 0.0
        %348 = vmatpush2.msra.mxu0 0.0
        %349 = vmatprep.subr.mxu0 0.0
        %350 = vmatpush2.msra.mxu0 0.0
        %351 = vmatprep.subr.mxu0 0.0
        %352 = vmatpush2.msra.mxu0 0.0
        %353 = vmatprep.mubr.f32.mxu0 0.0
        %354 = vmatmul.mubr.f32.gmra.mxu0 %v284
        %v355 = vpop.f32.mrf.mxu0
        %v356 = vadd.f32 %v275, %v355
        %v357 = vpop.f32.mrf.mxu0
        %358 = vmatprep.mubr.f32.mxu0 0.0
        %359 = vmatmul.mubr.f32.gmra.mxu0 %v287
        %v360 = vpop.f32.mrf.mxu0
        %v361 = vadd.f32 %v280, %v360
        %v362 = vpop.f32.mrf.mxu0
        %363 = vdwg.mxu0
        %s364 = scalar_lea.vmem %s1, 32
        %v365 = vld [vmem:[%s364] sm:$0xff]
        %v366 = vld [vmem:[%s364 + $0x8] sm:$0xff]
        %367 = vrot.lane.b32.xlu0 %v191, 126
        %v368 = vpop.permute.xlu0 %367
        %v371 = vsel %vm201, %v365, 0
        %v374 = vsel %vm201, %v366, 0
        %376 = vmatprep.subr.mxu0 0.0
        %377 = vmatpush1.msra.mxu0 0.0
        %378 = vmatprep.subr.mxu0 0.0
        %379 = vmatpush1.msra.mxu0 0.0
        %380 = vmatprep.subr.mxu0 0.0
        %381 = vmatpush1.msra.mxu0 0.0
        %382 = vmatprep.subr.mxu0 0.0
        %383 = vmatpush1.msra.mxu0 0.0
        %384 = vmatprep.subr.mxu0 0.0
        %385 = vmatpush1.msra.mxu0 0.0
        %386 = vmatprep.subr.mxu0 0.0
        %387 = vmatpush1.msra.mxu0 0.0
        %388 = vmatprep.subr.mxu0 0.0
        %389 = vmatpush1.msra.mxu0 0.0
        %390 = vmatprep.subr.mxu0 0.0
        %391 = vmatpush1.msra.mxu0 0.0
        %392 = vmatprep.subr.mxu0 0.0
        %393 = vmatpush1.msra.mxu0 0.0
        %394 = vmatprep.subr.mxu0 0.0
        %395 = vmatpush1.msra.mxu0 0.0
        %396 = vmatprep.subr.mxu0 0.0
        %397 = vmatpush1.msra.mxu0 0.0
        %398 = vmatprep.subr.mxu0 0.0
        %399 = vmatpush1.msra.mxu0 0.0
        %400 = vmatprep.subr.mxu0 0.0
        %401 = vmatpush1.msra.mxu0 0.0
        %402 = vmatprep.subr.mxu0 0.0
        %403 = vmatpush1.msra.mxu0 0.0
        %404 = vmatprep.subr.mxu0 0.0
        %405 = vmatpush1.msra.mxu0 0.0
        %406 = vmatprep.subr.mxu0 0.0
        %407 = vmatpush1.msra.mxu0 %v368
        %408 = vmatprep.subr.mxu0 0.0
        %409 = vmatpush2.msra.mxu0 0.0
        %410 = vmatprep.subr.mxu0 0.0
        %411 = vmatpush2.msra.mxu0 0.0
        %412 = vmatprep.subr.mxu0 0.0
        %413 = vmatpush2.msra.mxu0 0.0
        %414 = vmatprep.subr.mxu0 0.0
        %415 = vmatpush2.msra.mxu0 0.0
        %416 = vmatprep.subr.mxu0 0.0
        %417 = vmatpush2.msra.mxu0 0.0
        %418 = vmatprep.subr.mxu0 0.0
        %419 = vmatpush2.msra.mxu0 0.0
        %420 = vmatprep.subr.mxu0 0.0
        %421 = vmatpush2.msra.mxu0 0.0
        %422 = vmatprep.subr.mxu0 0.0
        %423 = vmatpush2.msra.mxu0 0.0
        %424 = vmatprep.subr.mxu0 0.0
        %425 = vmatpush2.msra.mxu0 0.0
        %426 = vmatprep.subr.mxu0 0.0
        %427 = vmatpush2.msra.mxu0 0.0
        %428 = vmatprep.subr.mxu0 0.0
        %429 = vmatpush2.msra.mxu0 0.0
        %430 = vmatprep.subr.mxu0 0.0
        %431 = vmatpush2.msra.mxu0 0.0
        %432 = vmatprep.subr.mxu0 0.0
        %433 = vmatpush2.msra.mxu0 0.0
        %434 = vmatprep.subr.mxu0 0.0
        %435 = vmatpush2.msra.mxu0 0.0
        %436 = vmatprep.subr.mxu0 0.0
        %437 = vmatpush2.msra.mxu0 0.0
        %438 = vmatprep.subr.mxu0 0.0
        %439 = vmatpush2.msra.mxu0 0.0
        %440 = vmatprep.mubr.f32.mxu0 0.0
        %441 = vmatmul.mubr.f32.gmra.mxu0 %v371
        %v442 = vpop.f32.mrf.mxu0
        %v443 = vadd.f32 0.0, %v442
        %v444 = vpop.f32.mrf.mxu0
        %445 = vmatprep.mubr.f32.mxu0 0.0
        %446 = vmatmul.mubr.f32.gmra.mxu0 %v374
        %v447 = vpop.f32.mrf.mxu0
        %v448 = vadd.f32 0.0, %v447
        %v449 = vpop.f32.mrf.mxu0
        %450 = vdwg.mxu0
        %v451 = vadd.f32 %v356, %v443
        %v452 = vadd.f32 %v361, %v448
        %v453 = vld [vmem:[%s2] sm:$0xff]
        %v454 = vld [vmem:[%s2 + $0x8] sm:$0xff]
        %456 = vset.pattern.permute.xlu0 0
        %457 = vperm.xlu0 %456, %v453
        %v458 = vpop.permute.xlu0 %457
        %461 = vset.pattern.permute.xlu0 0
        %462 = vperm.xlu0 %461, %v454
        %v463 = vpop.permute.xlu0 %462
        %v465 = vadd.f32 %v451, %v458
        %v466 = vadd.f32 %v452, %v463
        %vm467 = vcmask 130048
        %468 = vst.msk [vmem:[%s183] sm:$0xff] %vm467, %v465
        %469 = vst.msk [vmem:[%s183 + $0x8] sm:$0xff] %vm467, %v466
        %s470 = sand.u32 %s109, 1
        %s471 = scalar_lea.sflag [#allocation3], %s470
        %s472 = sand.u32 %s109, 1
        %s473 = smul.addr %s472, 16
        %s474 = scalar_lea.vmem [#allocation2], %s473
        // Predicated region
        $region33: #{conv_norm_forward.1} parent=31 // pred_check
          %p475 = pneg %p119
        $region34: #{conv_norm_forward.1} parent=31 // pred_check_branch
          %477 = sbr.rel (%p475) target = $region36
        $region35: #{conv_norm_forward.1} parent=31 // pred_region
          %s479 = ssub.s32 256, 256
          %480 = vsyncadd %s471, %s479
          %s481 = smul.addr %s21, 2
          %s482 = sadd.s32 %s22, %s481
          %s483 = smul.addr %s482, 128
          %s484 = scalar_lea.hbm %s3, %s483
          %s485 = sshll.u32 %s474, 4
          %s486 = int_to_ptr.vmem [resolvable:$true] %s485
          %491 = dma.vmem_to_hbm [thread:$0]  %s486, 256, %s484, %s471, 128, 128, 8
        $region36: #{conv_norm_forward.1} parent=31 // pred_fallthru
          _
      $region32: #{conv_norm_forward.1} parent=5 // pred_fallthru
        _
      %p492 = scmp.le.s32.totalorder 2, %s12
      // Predicated region
      $region37: #{conv_norm_forward.1} parent=5 // pred_check
        %p493 = pneg %p492
      $region38: #{conv_norm_forward.1} parent=5 // pred_check_branch
        %495 = sbr.rel (%p493) target = $region40
      $region39: #{conv_norm_forward.1} parent=5 // pred_region
        %s496 = ssub.s32 %s12, 2
        // Predicated region
        $region41: #{conv_norm_forward.1} parent=39 // pred_check
          %p497 = pneg %p125
        $region42: #{conv_norm_forward.1} parent=39 // pred_check_branch
          %499 = sbr.rel (%p497) target = $region44
        $region43: #{conv_norm_forward.1} parent=39 // pred_region
          %s500 = sand.u32 %s110, 1
          %s501 = scalar_lea.sflag [#allocation3], %s500
          %s502 = sand.u32 %s110, 1
          %s503 = smul.addr %s502, 16
          %s504 = scalar_lea.vmem [#allocation2], %s503
          %505 = dma.done %s501, 256
        $region44: #{conv_norm_forward.1} parent=39 // pred_fallthru
          _
      $region40: #{conv_norm_forward.1} parent=5 // pred_fallthru
        _
    $region6: #{conv_norm_forward.1} parent=1 // loop_footer
      %s16 = sadd.s32 1, %s12
    $region7: #{conv_norm_forward.1} parent=1 // loop_footer_branch
      %11 = sbr.rel target = $region3
    $region8: #{conv_norm_forward.1} parent=1 // loop_exit
      _
    %506 = vsyncpa [#allocation3], 1
    %s507 = scalar_lea.sflag [#allocation3], 1
    %508 = vsyncpa %s507, 1

</llo_original>
